<compile_context>
chip_gen: v7x
topology: tpu7x:2x2x1
jax: 0.10.0
libtpu: 0.0.40
codegen_flags: <defaults>
</compile_context>

<pallas_src>
import numpy as np

import jax
import jax.numpy as jnp
from jax.experimental import pallas as pl
from jax.experimental.pallas import tpu as pltpu


# ----------------------------------------------------------------------------------------
# Kernels
# ----------------------------------------------------------------------------------------

def _make_roll_kernel(C, K, CK):
    """Lane-dense path: grouped blade reduce via a log2(K)-step roll tree (no MXU)."""
    inv_c = 1.0 / float(C)

    def kernel(beta_ref, x_ref, o_ref):
        x = x_ref[...]                                   # (TB, CK) f32, lane-dense
        s = x * x * beta_ref[...]                        # beta_ref (1, CK) broadcasts (VPU)

        # Inclusive in-group prefix sums: after shifts 1, 2, ..., K/2, lane i holds
        # sum_{j=0..K-1} s[i-j]; lane c*K + (K-1) therefore holds q[b, c] exactly
        # (indices never wrap across the row for those lanes).  XLU work only.
        shift = 1
        while shift < K:
            s = s + pltpu.roll(s, shift=shift, axis=1)
            shift *= 2

        lane = jax.lax.broadcasted_iota(jnp.int32, (1, CK), 1)
        qsel = jnp.where(lane % K == K - 1, s, 0.0)      # drop lanes straddling groups
        norm = jnp.sqrt(jnp.abs(qsel))                   # EUP; sqrt(0)=0 on dropped lanes
        mean_norm = jnp.sum(norm, axis=-1, keepdims=True) * inv_c     # (TB, 1)

        # Exact reciprocal: one divide per batch row keeps the 1e-5 tolerance comfortably.
        o_ref[...] = (x * (1.0 / mean_norm)).astype(o_ref.dtype)

    return kernel


def _make_matmul_kernel(C, K, CK):
    """Fallback path (small / unaligned CK): grouped reduce via one small MXU matmul
    against a precomputed, VMEM-resident block-diagonal beta matrix G (CK, C)."""
    inv_c = 1.0 / float(C)

    def kernel(g_ref, x_ref, o_ref):
        x = x_ref[...]                                   # (TB, CK)
        q = jnp.dot(x * x, g_ref[...], preferred_element_type=jnp.float32)   # (TB, C)
        norm = jnp.sqrt(jnp.abs(q))
        mean_norm = jnp.sum(norm, axis=-1, keepdims=True) * inv_c             # (TB, 1)
        o_ref[...] = (x * (1.0 / mean_norm)).astype(o_ref.dtype)

    return kernel


# ----------------------------------------------------------------------------------------
# Tiling / budgets
# ----------------------------------------------------------------------------------------

def _vmem_budgets():
    """(tile_budget_bytes, vmem_limit_bytes) per generation.

    Working set per step ~= 6 live tiles (double-buffered in + out, plus x*x / s temps),
    so tile budgets are kept well under the scoped limit.  v7x has 64 MiB VMEM per TC;
    v5e/v6e have 128 MiB.
    """
    vmem_bytes = 128 * 1024 * 1024
    try:
        vmem_bytes = int(getattr(pltpu.get_tpu_info(), "vmem_capacity_bytes", vmem_bytes))
    except Exception:
        pass
    if vmem_bytes >= 128 * 1024 * 1024:          # v5e / v6e
        return 6 * 1024 * 1024, 64 * 1024 * 1024
    return 4 * 1024 * 1024, 40 * 1024 * 1024     # v7x (64 MiB physical per TC)


def _pick_batch_tile(B, CK, tile_budget_bytes, min_grid_steps):
    """Rows per grid step: bounded by the VMEM tile budget AND capped so the grid has at
    least ~min_grid_steps steps (pipeline overlap; work for both v7x TensorCores)."""
    rows_budget = max(8, (tile_budget_bytes // (CK * 4)) // 8 * 8)
    rows_pipeline = (B + min_grid_steps - 1) // min_grid_steps
    rows_pipeline = max(8, ((rows_pipeline + 7) // 8) * 8)      # sublane-aligned
    tb = min(rows_budget, rows_pipeline)
    if tb >= B:
        return B            # single full-batch block (full dims are always legal)
    return tb               # partial blocks: multiple of 8 rows


# ----------------------------------------------------------------------------------------
# Wrapper
# ----------------------------------------------------------------------------------------

def mv_layernorm(x, beta, *, tile_budget_bytes=None, min_grid_steps=4):
    """x: (B, C, K) float32 multivectors; beta: length-K blade metric (concrete values)."""
    B, C, K = x.shape
    CK = C * K
    beta = np.asarray(beta, dtype=np.float32).reshape(-1)
    assert beta.shape[0] == K

    default_tile_budget, vmem_limit_bytes = _vmem_budgets()
    if tile_budget_bytes is None:
        tile_budget_bytes = default_tile_budget

    # Free relayout: (C, K) is contiguous, so this is a pure metadata reshape.
    x2 = x.reshape(B, CK)

    TB = _pick_batch_tile(B, CK, tile_budget_bytes, min_grid_steps)
    grid = (pl.cdiv(B, TB),)

    use_roll = (CK % 128 == 0) and (K & (K - 1) == 0)
    if use_roll:
        kernel = _make_roll_kernel(C, K, CK)
        # Lane-wise beta: aux[0, c*K + k] = beta[k].  Constant block -> one DMA, VMEM-resident.
        aux = jnp.asarray(np.tile(beta, C).reshape(1, CK))
        aux_spec = pl.BlockSpec((1, CK), lambda i: (0, 0))
    else:
        # Small / unaligned CK: block-diagonal beta matrix G[c*K + k, c] = beta[k],
        # precomputed on host (never rebuilt in-kernel), constant block index every step.
        kernel = _make_matmul_kernel(C, K, CK)
        g = np.zeros((CK, C), dtype=np.float32)
        idx_c = np.arange(C)
        for k in range(K):
            g[idx_c * K + k, idx_c] = beta[k]
        aux = jnp.asarray(g)
        aux_spec = pl.BlockSpec((CK, C), lambda i: (0, 0))

    cost = pl.CostEstimate(
        flops=6 * B * CK,
        transcendentals=B * C,
        bytes_accessed=2 * B * CK * 4 + int(aux.size) * 4,
    )

    out2 = pl.pallas_call(
        kernel,
        out_shape=jax.ShapeDtypeStruct((B, CK), x.dtype),
        grid_spec=pltpu.PrefetchScalarGridSpec(
            num_scalar_prefetch=0,
            grid=grid,
            in_specs=[aux_spec,
                      pl.BlockSpec((TB, CK), lambda i: (i, 0))],
            out_specs=pl.BlockSpec((TB, CK), lambda i: (i, 0)),
        ),
        compiler_params=pltpu.CompilerParams(
            dimension_semantics=("parallel",),   # independent batch blocks
            vmem_limit_bytes=vmem_limit_bytes,
        ),
        cost_estimate=cost,
    )(aux, x2)
    return out2.reshape(B, C, K)


# ----------------------------------------------------------------------------------------
# Reference & test
# ----------------------------------------------------------------------------------------

def _blade_metric_3d_euclidean():
    # Cl(3,0): blades [1, e1, e2, e3, e12, e13, e23, e123]; q-form sign of a grade-g blade
    # is (-1)^(g*(g-1)/2) for a (+,+,+) metric -> [1,1,1,1,-1,-1,-1,-1].
    grades = np.array([0, 1, 1, 1, 2, 2, 2, 3], dtype=np.int64)
    return ((-1.0) ** (grades * (grades - 1) // 2)).astype(np.float32)


def _reference(x, beta):
    beta = jnp.asarray(beta, dtype=jnp.float32)
    q = jnp.sum(x * x * beta[None, None, :], axis=-1, keepdims=True)
    norm = jnp.sqrt(jnp.abs(q))
    mean_norm = jnp.mean(norm, axis=1, keepdims=True)
    return x / mean_norm


if __name__ == "__main__":
    beta = _blade_metric_3d_euclidean()   # K = 8 blades

    # 1) Small shape matching the module usage (CK = 32 < 128 -> matmul fallback path).
    B, C, K = 2, 4, 8
    x = jax.random.normal(jax.random.PRNGKey(0), (B, C, K), dtype=jnp.float32)
    out = jax.block_until_ready(mv_layernorm(x, beta))
    ref = _reference(x, beta)
    assert jnp.allclose(out, ref, atol=1e-5, rtol=1e-5), "mismatch vs reference (fallback path)"

    # 2) Lane-dense shape (CK = 128) exercising the roll-tree path, with B not divisible
    #    by the batch tile (partial last block -> masked writeback).
    B2, C2 = 20, 16
    x2 = jax.random.normal(jax.random.PRNGKey(1), (B2, C2, K), dtype=jnp.float32)
    out2 = jax.block_until_ready(mv_layernorm(x2, beta, min_grid_steps=4))
    ref2 = _reference(x2, beta)
    assert jnp.allclose(out2, ref2, atol=1e-5, rtol=1e-5), "mismatch vs reference (roll path)"

    print("KERNEL_OK")
</pallas_src>

<mosaic_0001>
module attributes {stable_mosaic.version = 11 : i64} {
  func.func @kernel(%arg0: i32, %arg1: memref<32x4xf32, #tpu.memory_space<vmem>>, %arg2: memref<2x32xf32, #tpu.memory_space<vmem>>, %arg3: memref<2x32xf32, #tpu.memory_space<vmem>>) attributes {dimension_semantics = [#tpu.dimension_semantics<parallel>], iteration_bounds = array<i64: 1>, scalar_prefetch = 0 : i64, scratch_operands = 0 : i64, tpu.core_type = #tpu.core_type<tc>, window_params = [{pipeline_mode = #tpu.pipeline_mode<synchronous>, transform_indices = @transform_0, window_bounds = array<i64: 32, 4>}, {transform_indices = @transform_1, window_bounds = array<i64: 2, 32>}, {transform_indices = @transform_2, window_bounds = array<i64: 2, 32>}]} {
    %c0 = arith.constant 0 : index
    %c0_0 = arith.constant 0 : index
    %0 = vector.load %arg2[%c0, %c0_0] : memref<2x32xf32, #tpu.memory_space<vmem>>, vector<2x32xf32>
    %1 = arith.mulf %0, %0 : vector<2x32xf32>
    %c0_1 = arith.constant 0 : index
    %c0_2 = arith.constant 0 : index
    %2 = vector.load %arg1[%c0_1, %c0_2] : memref<32x4xf32, #tpu.memory_space<vmem>>, vector<32x4xf32>
    %cst = arith.constant dense<0.000000e+00> : vector<2x4xf32>
    %3 = tpu.matmul %1, %2, %cst {dimension_numbers = #tpu.dot_dimension_numbers<[1], [0], [0], [1], [0, 0, 1, 1], [], []>} : vector<2x32xf32>, vector<32x4xf32>, vector<2x4xf32> -> vector<2x4xf32>
    %4 = math.absf %3 : vector<2x4xf32>
    %5 = math.sqrt %4 : vector<2x4xf32>
    %cst_3 = arith.constant dense<0.000000e+00> : vector<2xf32>
    %6 = vector.multi_reduction <add>, %5, %cst_3 [1] : vector<2x4xf32> to vector<2xf32>
    %7 = vector.shape_cast %6 : vector<2xf32> to vector<2x1xf32>
    %cst_4 = arith.constant 2.500000e-01 : f32
    %8 = vector.broadcast %cst_4 : f32 to vector<2x1xf32>
    %9 = arith.mulf %7, %8 : vector<2x1xf32>
    %cst_5 = arith.constant 1.000000e+00 : f32
    %10 = vector.broadcast %cst_5 : f32 to vector<2x1xf32>
    %11 = arith.divf %10, %9 : vector<2x1xf32>
    %12 = vector.broadcast %11 : vector<2x1xf32> to vector<2x32xf32>
    %13 = arith.mulf %0, %12 : vector<2x32xf32>
    %c0_6 = arith.constant 0 : index
    %c0_7 = arith.constant 0 : index
    %14 = vector.load %arg3[%c0_6, %c0_7] : memref<2x32xf32, #tpu.memory_space<vmem>>, vector<2x32xf32>
    tpu.vector_store %arg3[%c0_6, %c0_7], %13 {strides = array<i32>} : memref<2x32xf32, #tpu.memory_space<vmem>>, vector<2x32xf32>,
    return
  }
  func.func @transform_0(%arg0: i32) -> (i32, i32) {
    %c0_i32 = arith.constant 0 : i32
    %c0_i32_0 = arith.constant 0 : i32
    %c0_i32_1 = arith.constant 0 : i32
    return %c0_i32, %c0_i32_0 : i32, i32
  }
  func.func @transform_1(%arg0: i32) -> (i32, i32) {
    %c0_i32 = arith.constant 0 : i32
    %c0_i32_0 = arith.constant 0 : i32
    return %arg0, %c0_i32 : i32, i32
  }
  func.func @transform_2(%arg0: i32) -> (i32, i32) {
    %c0_i32 = arith.constant 0 : i32
    %c0_i32_0 = arith.constant 0 : i32
    return %arg0, %c0_i32 : i32, i32
  }
}

</mosaic_0001>

<llo_original>
// kernel: tpu_custom_call.1
$region0: #{tpu_custom_call.1}
  #allocation0 [shape = 'u32[]', space=smem, size = 0x4, offset = 0x4, fixed_abs, tag = 'smem constant byte address 0x4 - core index']
  #allocation1 [shape = 'u32[144,128]{1,0:T(1,128)}', space=vmem, size = 0x12000, scoped, tag = 'internal scratch']
  %s0 = inlined_call_operand.hbm [shape: f32[32,4], index: 0, kind: input, shape index: {}]
  %s1 = inlined_call_operand.hbm [shape: f32[2,32], index: 1, kind: input, shape index: {}]
  %s2 = inlined_call_operand.hbm [shape: f32[2,32], index: 2, kind: output, shape index: {}]
  %s3 = sld [smem:[#allocation0]]
  $region26: #{tpu_custom_call.1} parent=0
    _
  %s5 = ssub.s32 1, %s3
  %s6 = scalar_select 0, %s5, %s3
  $region1: #{tpu_custom_call.1} parent=0
    #allocation2 [shape = 'u8[16384]{0}', space=vmem, size = 0x4000, scoped, tag = 'input window, operand 0, single buffered']
    #allocation3 [shape = 's32[1]{0}', space=sflag, size = 0x4, scoped, tag = 'scoped memory for tpu_custom_call.1']
    #allocation4 [shape = 's32[1]{0}', space=sflag, size = 0x4, scoped, tag = 'scoped memory for tpu_custom_call.1']
    #allocation5 [shape = 'u8[1024]{0}', space=vmem, size = 0x400, scoped, tag = 'input window, operand 1, single buffered']
    #allocation6 [shape = 's32[1]{0}', space=sflag, size = 0x4, scoped, tag = 'scoped memory for tpu_custom_call.1']
    #allocation7 [shape = 'u8[1024]{0}', space=vmem, size = 0x400, scoped, tag = 'output window, operand 0, single buffered']
    %7 = vsyncpa [#allocation3], 0
    %8 = vsyncpa [#allocation6], 0
    %9 = vsyncpa [#allocation4], 0
    // Predicated region
    $region2: #{tpu_custom_call.1} parent=1 // pred_check
      _
    $region3: #{tpu_custom_call.1} parent=1 // pred_check_branch
      %11 = sbr.rel (0) target = $region5
    $region4: #{tpu_custom_call.1} parent=1 // pred_region
      %s13 = ssub.s32 512, 512
      %14 = vsyncadd [#allocation3], %s13
      %s15 = sshll.u32 [#allocation2], 4
      %s16 = int_to_ptr.vmem [resolvable:$true] %s15
      %21 = dma.hbm_to_vmem [thread:$0]  %s0, 512, %s16, [#allocation3], 128, 128, 8
    $region5: #{tpu_custom_call.1} parent=1 // pred_fallthru
      _
    // Predicated region
    $region6: #{tpu_custom_call.1} parent=1 // pred_check
      _
    $region7: #{tpu_custom_call.1} parent=1 // pred_check_branch
      %23 = sbr.rel (0) target = $region9
    $region8: #{tpu_custom_call.1} parent=1 // pred_region
      %s25 = ssub.s32 32, 32
      %26 = vsyncadd [#allocation6], %s25
      %s28 = sshll.u32 [#allocation5], 4
      %s29 = int_to_ptr.vmem [resolvable:$true] %s28
      %31 = dma.hbm_to_vmem [thread:$0]  %s1, 32, %s29, [#allocation6]
    $region9: #{tpu_custom_call.1} parent=1 // pred_fallthru
      _
    // Predicated region
    $region10: #{tpu_custom_call.1} parent=1 // pred_check
      _
    $region11: #{tpu_custom_call.1} parent=1 // pred_check_branch
      %33 = sbr.rel (0) target = $region13
    $region12: #{tpu_custom_call.1} parent=1 // pred_region
      %34 = dma.done [#allocation3], 512
    $region13: #{tpu_custom_call.1} parent=1 // pred_fallthru
      _
    // Predicated region
    $region14: #{tpu_custom_call.1} parent=1 // pred_check
      _
    $region15: #{tpu_custom_call.1} parent=1 // pred_check_branch
      %36 = sbr.rel (0) target = $region17
    $region16: #{tpu_custom_call.1} parent=1 // pred_region
      %37 = dma.done [#allocation6], 32
    $region17: #{tpu_custom_call.1} parent=1 // pred_fallthru
      _
    %v38 = vld [vmem:[#allocation5] sm:$0x3]
    %v39 = vmul.f32 %v38, %v38
    %v40 = vld [vmem:[#allocation2] sm:$0xff]
    %v41 = vld [vmem:[#allocation2 + $0x8] sm:$0xff]
    %v42 = vld [vmem:[#allocation2 + $0x10] sm:$0xff]
    %v43 = vld [vmem:[#allocation2 + $0x18] sm:$0xff]
    %vm44 = vcmask 261120
    %v46 = vsel %vm44, %v39, 0
    %48 = vmatprep.subr.mxu0 0.0
    %49 = vmatpush1.msra.mxu0 %v40
    %50 = vmatprep.subr.mxu0 0.0
    %51 = vmatpush1.msra.mxu0 %v41
    %52 = vmatprep.subr.mxu0 0.0
    %53 = vmatpush1.msra.mxu0 %v42
    %54 = vmatprep.subr.mxu0 0.0
    %55 = vmatpush1.msra.mxu0 %v43
    %56 = vmatprep.subr.mxu0 0.0
    %57 = vmatpush1.msra.mxu0 0.0
    %58 = vmatprep.subr.mxu0 0.0
    %59 = vmatpush1.msra.mxu0 0.0
    %60 = vmatprep.subr.mxu0 0.0
    %61 = vmatpush1.msra.mxu0 0.0
    %62 = vmatprep.subr.mxu0 0.0
    %63 = vmatpush1.msra.mxu0 0.0
    %64 = vmatprep.subr.mxu0 0.0
    %65 = vmatpush1.msra.mxu0 0.0
    %66 = vmatprep.subr.mxu0 0.0
    %67 = vmatpush1.msra.mxu0 0.0
    %68 = vmatprep.subr.mxu0 0.0
    %69 = vmatpush1.msra.mxu0 0.0
    %70 = vmatprep.subr.mxu0 0.0
    %71 = vmatpush1.msra.mxu0 0.0
    %72 = vmatprep.subr.mxu0 0.0
    %73 = vmatpush1.msra.mxu0 0.0
    %74 = vmatprep.subr.mxu0 0.0
    %75 = vmatpush1.msra.mxu0 0.0
    %76 = vmatprep.subr.mxu0 0.0
    %77 = vmatpush1.msra.mxu0 0.0
    %78 = vmatprep.subr.mxu0 0.0
    %79 = vmatpush1.msra.mxu0 0.0
    %80 = vmatprep.subr.mxu0 0.0
    %81 = vmatpush1.msra.mxu0 0.0
    %82 = vmatprep.subr.mxu0 0.0
    %83 = vmatpush1.msra.mxu0 0.0
    %84 = vmatprep.subr.mxu0 0.0
    %85 = vmatpush1.msra.mxu0 0.0
    %86 = vmatprep.subr.mxu0 0.0
    %87 = vmatpush1.msra.mxu0 0.0
    %88 = vmatprep.subr.mxu0 0.0
    %89 = vmatpush1.msra.mxu0 0.0
    %90 = vmatprep.subr.mxu0 0.0
    %91 = vmatpush1.msra.mxu0 0.0
    %92 = vmatprep.subr.mxu0 0.0
    %93 = vmatpush1.msra.mxu0 0.0
    %94 = vmatprep.subr.mxu0 0.0
    %95 = vmatpush1.msra.mxu0 0.0
    %96 = vmatprep.subr.mxu0 0.0
    %97 = vmatpush1.msra.mxu0 0.0
    %98 = vmatprep.subr.mxu0 0.0
    %99 = vmatpush1.msra.mxu0 0.0
    %100 = vmatprep.subr.mxu0 0.0
    %101 = vmatpush1.msra.mxu0 0.0
    %102 = vmatprep.subr.mxu0 0.0
    %103 = vmatpush1.msra.mxu0 0.0
    %104 = vmatprep.subr.mxu0 0.0
    %105 = vmatpush1.msra.mxu0 0.0
    %106 = vmatprep.subr.mxu0 0.0
    %107 = vmatpush1.msra.mxu0 0.0
    %108 = vmatprep.subr.mxu0 0.0
    %109 = vmatpush1.msra.mxu0 0.0
    %110 = vmatprep.subr.mxu0 0.0
    %111 = vmatpush1.msra.mxu0 0.0
    %112 = vmatprep.mubr.f32.mxu0 0.0
    %113 = vmatmul.mubr.f32.gmra.mrb[0].mxu0 %v46
    %v114 = vpop.f32.mrb[0].mxu0
    %v115 = vadd.f32 0.0, %v114
    %v116 = vpop.f32.mrb[0].mxu0
    %117 = vdwg.mxu0
    %v118 = vand.u32 2147483647, %v115
    %v119 = vrsqrt.pop %v118
    %v120 = vmul.f32 %v118, %v119
    %vm121 = vcmp.eq.f32.partialorder %v118, inf
    %v122 = vsel %vm121, %v118, %v120
    %vm123 = vcmp.eq.f32.partialorder %v118, 0.0
    %v124 = vand.u32 %v118, 2147483648
    %v125 = vsel %vm123, %v124, %v122
    %vm126 = vcmask 25600
    %v127 = vsel %vm126, %v125, 0.0
    %128 = vadd.xlane.f32.xlu0 %v127
    %v129 = vpop.xlane.xlu0 %128
    %v130 = vmul.f32 %v129, 0.25
    %v131 = vrcp.pop %v130
    %v132 = vmul.f32 1.0, %v131
    %v133 = vmul.f32 %v38, %v132
    %vm134 = vcmask 254976
    %135 = vst.msk [vmem:[#allocation7] sm:$0x3] %vm134, %v133
    // Predicated region
    $region18: #{tpu_custom_call.1} parent=1 // pred_check
      _
    $region19: #{tpu_custom_call.1} parent=1 // pred_check_branch
      %137 = sbr.rel (0) target = $region21
    $region20: #{tpu_custom_call.1} parent=1 // pred_region
      %s139 = ssub.s32 32, 32
      %140 = vsyncadd [#allocation4], %s139
      %s142 = sshll.u32 [#allocation7], 4
      %s143 = int_to_ptr.vmem [resolvable:$true] %s142
      %145 = dma.vmem_to_hbm [thread:$0]  %s143, 32, %s2, [#allocation4]
    $region21: #{tpu_custom_call.1} parent=1 // pred_fallthru
      _
    // Predicated region
    $region22: #{tpu_custom_call.1} parent=1 // pred_check
      _
    $region23: #{tpu_custom_call.1} parent=1 // pred_check_branch
      %147 = sbr.rel (0) target = $region25
    $region24: #{tpu_custom_call.1} parent=1 // pred_region
      %148 = dma.done [#allocation4], 32
    $region25: #{tpu_custom_call.1} parent=1 // pred_fallthru
      _
    %149 = vsyncpa [#allocation3], 1
    %150 = vsyncpa [#allocation6], 1
    %151 = vsyncpa [#allocation4], 1

</llo_original>
